<compile_context>
chip_gen: v7x
topology: tpu7x:2x2x1
jax: 0.10.0
libtpu: 0.0.40
codegen_flags: <defaults>
</compile_context>

<pallas_src>
import functools

import jax
import jax.numpy as jnp
from jax.experimental import pallas as pl
from jax.experimental.pallas import tpu as pltpu

LANE = 128         # vreg lane width
SUBLANE = 8        # vreg sublane count
HIDDEN = 256       # fixed by fc1 in the module
MAX_TILE_B = 2048  # batch rows per grid step (~6 MiB working set)


def _round_up(n, m):
    return (n + m - 1) // m * m


def _device_kind():
    try:
        return jax.devices()[0].device_kind.lower()
    except Exception:
        return ""


def policy_kernel(x_ref, w1_ref, b1_ref, w2_ref, b2_ref, o_ref, *, bf16_epilogue):
    # fc1: bf16 MXU matmul with f32 accumulation.
    h = jnp.dot(x_ref[...], w1_ref[...], preferred_element_type=jnp.float32)
    if bf16_epilogue:
        # v6e/v7x: bias + ReLU on the bf16 VPU (halves vreg/VALU traffic of the
        # only elementwise region); fc2 consumes the bf16 activation directly.
        h = jnp.maximum(h.astype(jnp.bfloat16) + b1_ref[...], 0.0)
    else:
        # v4/v5e: no bf16 VPU -> keep the epilogue in f32, cast once for fc2.
        h = jnp.maximum(h + b1_ref[...].astype(jnp.float32), 0.0)
        h = h.astype(jnp.bfloat16)
    # fc2: bf16 MXU matmul, f32 accumulation; bias add in f32, store in out dtype.
    out = jnp.dot(h, w2_ref[...], preferred_element_type=jnp.float32)
    o_ref[...] = (out + b2_ref[...]).astype(o_ref.dtype)


def prepare_params(w1, b1, w2, b2):
    """One-time weight prep, hoisted out of the per-step forward.

    Casts the matmul operands to bf16 and lane-pads fc2's output dim to a
    multiple of 128 (lane-dense, unmasked stores).  Call once at init and pass
    the result to `policy_forward` every env step.
    """
    in_dim, hidden = w1.shape
    action_dim = w2.shape[1]
    out_pad = _round_up(action_dim, LANE)
    w1_p = jnp.asarray(w1, jnp.bfloat16)                               # (in_dim, 256)
    b1_p = jnp.asarray(b1, jnp.bfloat16).reshape(1, hidden)            # (1, 256)
    w2_p = jnp.pad(jnp.asarray(w2, jnp.bfloat16),
                   ((0, 0), (0, out_pad - action_dim)))                # (256, out_pad)
    b2_p = jnp.pad(jnp.asarray(b2, jnp.float32).reshape(1, -1),
                   ((0, 0), (0, out_pad - action_dim)))                # (1, out_pad)
    return w1_p, b1_p, w2_p, b2_p


@functools.partial(jax.jit, static_argnames=("action_dim", "out_dtype"))
def policy_forward(x, w1, b1, w2, b2, *, action_dim, out_dtype=jnp.bfloat16):
    """x: (B, input_dim); (w1, b1, w2, b2) from `prepare_params`.
    Returns (B, action_dim) in `out_dtype` (f32 accumulation throughout)."""
    B, in_dim = x.shape
    hidden = w1.shape[1]
    out_pad = w2.shape[1]

    # Batch tiling: a single grid step for small batches, MAX_TILE_B-row tiles
    # for large ones (amortizes the ~0.35 us per-step pipeline overhead).
    tile_b = min(_round_up(B, SUBLANE), MAX_TILE_B)
    b_pad = _round_up(B, tile_b)

    # Only the batch dim is padded; K stays at the true in_dim (full-dim block).
    x_p = x.astype(jnp.bfloat16)
    if b_pad != B:
        x_p = jnp.pad(x_p, ((0, b_pad - B), (0, 0)))

    grid = (b_pad // tile_b,)

    kind = _device_kind()
    bf16_epilogue = ("v6" in kind) or ("v7" in kind)
    # v7x has 2 TensorCores; CORE_PARALLEL actually shards the batch axis across
    # them (plain "parallel" does not change codegen). Only used when the grid
    # splits evenly across the two cores.
    if "v7" in kind and grid[0] % 2 == 0:
        dim_sem = (pltpu.CORE_PARALLEL,)
    else:
        dim_sem = (pltpu.PARALLEL,)

    itemsize = lambda a: jnp.dtype(a.dtype).itemsize
    cost = pl.CostEstimate(
        flops=2 * b_pad * (in_dim * hidden + hidden * out_pad),
        transcendentals=0,
        bytes_accessed=int(
            x_p.size * itemsize(x_p)
            + w1.size * itemsize(w1) + b1.size * itemsize(b1)
            + w2.size * itemsize(w2) + b2.size * itemsize(b2)
            + b_pad * out_pad * jnp.dtype(out_dtype).itemsize),
    )

    # TODO(synk): resident operands (w1/b1/w2/b2) could take
    # pipeline_mode=pl.Buffered(1) to drop their unused second pipeline buffer
    # (~130 KiB VMEM); omitted to keep the call maximally portable.
    out = pl.pallas_call(
        functools.partial(policy_kernel, bf16_epilogue=bf16_epilogue),
        out_shape=jax.ShapeDtypeStruct((b_pad, out_pad), out_dtype),
        grid_spec=pltpu.PrefetchScalarGridSpec(
            num_scalar_prefetch=0,
            grid=grid,
            in_specs=[
                pl.BlockSpec((tile_b, in_dim), lambda i: (i, 0)),   # x rows stream
                pl.BlockSpec((in_dim, hidden), lambda i: (0, 0)),   # w1 resident
                pl.BlockSpec((1, hidden), lambda i: (0, 0)),        # b1 resident
                pl.BlockSpec((hidden, out_pad), lambda i: (0, 0)),  # w2 resident
                pl.BlockSpec((1, out_pad), lambda i: (0, 0)),       # b2 resident
            ],
            out_specs=pl.BlockSpec((tile_b, out_pad), lambda i: (i, 0)),
        ),
        compiler_params=pltpu.CompilerParams(dimension_semantics=dim_sem),
        cost_estimate=cost,
    )(x_p, w1, b1, w2, b2)

    # Strip batch / lane padding.
    return out[:B, :action_dim]


def init_linear(key, fan_in, fan_out):
    """Matches torch.nn.Linear default init: U(-1/sqrt(fan_in), 1/sqrt(fan_in))."""
    kw, kb = jax.random.split(key)
    bound = 1.0 / jnp.sqrt(jnp.asarray(fan_in, jnp.float32))
    w = jax.random.uniform(kw, (fan_in, fan_out), jnp.float32, -bound, bound)
    b = jax.random.uniform(kb, (fan_out,), jnp.float32, -bound, bound)
    return w, b


def _reference(x, w1, b1, w2, b2):
    # Matches the kernel's precision: bf16 matmul operands, f32 accumulation,
    # bf16 fc1 activation fed to fc2, f32 final accumulation.
    f32 = jnp.float32
    xb = x.astype(jnp.bfloat16).astype(f32)
    w1b = w1.astype(jnp.bfloat16).astype(f32)
    b1b = b1.astype(jnp.bfloat16).astype(f32)
    w2b = w2.astype(jnp.bfloat16).astype(f32)
    h = jnp.maximum(
        jnp.dot(xb, w1b, precision=jax.lax.Precision.HIGHEST) + b1b.reshape(1, -1), 0.0)
    h = h.astype(jnp.bfloat16).astype(f32)
    return jnp.dot(h, w2b, precision=jax.lax.Precision.HIGHEST) + b2.reshape(1, -1)


if __name__ == "__main__":
    # Small synthetic shapes implied by the forward pass.
    input_dim = 32     # self.model.output_dim (identity feature extractor)
    action_dim = 8     # action_space.shape[0]

    key = jax.random.PRNGKey(0)
    kx, k1, k2 = jax.random.split(key, 3)
    w1, b1 = init_linear(k1, input_dim, HIDDEN)
    w2, b2 = init_linear(k2, HIDDEN, action_dim)

    # One-time weight prep, outside the per-step hot path.
    params = prepare_params(w1, b1, w2, b2)

    for batch in (8, 12):   # 12 exercises the batch-padding path
        kx, sub = jax.random.split(kx)
        x = jax.random.normal(sub, (batch, input_dim), jnp.float32)

        out = policy_forward(x, *params, action_dim=action_dim)
        out = jax.block_until_ready(out)
        assert out.shape == (batch, action_dim), out.shape
        out_f32 = out.astype(jnp.float32)

        # Precision-matched reference (bf16 operands/activation, f32 accumulate;
        # the bf16 output adds <= ~1e-3 absolute rounding on O(0.3) values).
        ref = _reference(x, w1, b1, w2, b2)
        assert jnp.allclose(out_f32, ref, atol=2e-2, rtol=2e-2), float(
            jnp.max(jnp.abs(out_f32 - ref)))

        # Loose check against the pure-f32 PyTorch math (deliberate bf16
        # precision reduction in the kernel, see module docstring).
        ref_f32 = (jnp.maximum(x @ w1 + b1.reshape(1, -1), 0.0) @ w2
                   + b2.reshape(1, -1))
        assert jnp.allclose(out_f32, ref_f32, atol=5e-2, rtol=5e-2)

    print("KERNEL_OK")
</pallas_src>

<mosaic_0001>
module attributes {stable_mosaic.version = 11 : i64} {
  func.func @policy_kernel(%arg0: i32, %arg1: memref<8x32xbf16, #tpu.memory_space<vmem>>, %arg2: memref<32x256xbf16, #tpu.memory_space<vmem>>, %arg3: memref<1x256xbf16, #tpu.memory_space<vmem>>, %arg4: memref<256x128xbf16, #tpu.memory_space<vmem>>, %arg5: memref<1x128xf32, #tpu.memory_space<vmem>>, %arg6: memref<8x128xbf16, #tpu.memory_space<vmem>>) attributes {dimension_semantics = [#tpu.dimension_semantics<parallel>], iteration_bounds = array<i64: 1>, scalar_prefetch = 0 : i64, scratch_operands = 0 : i64, tpu.core_type = #tpu.core_type<tc>, window_params = [{transform_indices = @transform_0, window_bounds = array<i64: 8, 32>}, {pipeline_mode = #tpu.pipeline_mode<synchronous>, transform_indices = @transform_1, window_bounds = array<i64: 32, 256>}, {pipeline_mode = #tpu.pipeline_mode<synchronous>, transform_indices = @transform_2, window_bounds = array<i64: 1, 256>}, {pipeline_mode = #tpu.pipeline_mode<synchronous>, transform_indices = @transform_3, window_bounds = array<i64: 256, 128>}, {pipeline_mode = #tpu.pipeline_mode<synchronous>, transform_indices = @transform_4, window_bounds = array<i64: 1, 128>}, {transform_indices = @transform_5, window_bounds = array<i64: 8, 128>}]} {
    %c0 = arith.constant 0 : index
    %c0_0 = arith.constant 0 : index
    %0 = vector.load %arg1[%c0, %c0_0] : memref<8x32xbf16, #tpu.memory_space<vmem>>, vector<8x32xbf16>
    %c0_1 = arith.constant 0 : index
    %c0_2 = arith.constant 0 : index
    %1 = vector.load %arg2[%c0_1, %c0_2] : memref<32x256xbf16, #tpu.memory_space<vmem>>, vector<32x256xbf16>
    %cst = arith.constant dense<0.000000e+00> : vector<8x256xf32>
    %2 = tpu.matmul %0, %1, %cst {dimension_numbers = #tpu.dot_dimension_numbers<[1], [0], [0], [1], [0, 0, 1, 1], [], []>} : vector<8x32xbf16>, vector<32x256xbf16>, vector<8x256xf32> -> vector<8x256xf32>
    %c0_3 = arith.constant 0 : index
    %c0_4 = arith.constant 0 : index
    %3 = vector.load %arg3[%c0_3, %c0_4] : memref<1x256xbf16, #tpu.memory_space<vmem>>, vector<1x256xbf16>
    %4 = arith.extf %3 : vector<1x256xbf16> to vector<1x256xf32>
    %5 = vector.broadcast %4 : vector<1x256xf32> to vector<8x256xf32>
    %6 = arith.addf %2, %5 : vector<8x256xf32>
    %cst_5 = arith.constant 0.000000e+00 : f32
    %7 = vector.broadcast %cst_5 : f32 to vector<8x256xf32>
    %8 = arith.maximumf %6, %7 : vector<8x256xf32>
    %9 = arith.truncf %8 : vector<8x256xf32> to vector<8x256xbf16>
    %c0_6 = arith.constant 0 : index
    %c0_7 = arith.constant 0 : index
    %10 = vector.load %arg4[%c0_6, %c0_7] : memref<256x128xbf16, #tpu.memory_space<vmem>>, vector<256x128xbf16>
    %cst_8 = arith.constant dense<0.000000e+00> : vector<8x128xf32>
    %11 = tpu.matmul %9, %10, %cst_8 {dimension_numbers = #tpu.dot_dimension_numbers<[1], [0], [0], [1], [0, 0, 1, 1], [], []>} : vector<8x256xbf16>, vector<256x128xbf16>, vector<8x128xf32> -> vector<8x128xf32>
    %c0_9 = arith.constant 0 : index
    %c0_10 = arith.constant 0 : index
    %12 = vector.load %arg5[%c0_9, %c0_10] : memref<1x128xf32, #tpu.memory_space<vmem>>, vector<1x128xf32>
    %13 = vector.broadcast %12 : vector<1x128xf32> to vector<8x128xf32>
    %14 = arith.addf %11, %13 : vector<8x128xf32>
    %15 = arith.truncf %14 : vector<8x128xf32> to vector<8x128xbf16>
    %c0_11 = arith.constant 0 : index
    %c0_12 = arith.constant 0 : index
    %16 = vector.load %arg6[%c0_11, %c0_12] : memref<8x128xbf16, #tpu.memory_space<vmem>>, vector<8x128xbf16>
    tpu.vector_store %arg6[%c0_11, %c0_12], %15 {strides = array<i32>} : memref<8x128xbf16, #tpu.memory_space<vmem>>, vector<8x128xbf16>,
    return
  }
  func.func @transform_0(%arg0: i32) -> (i32, i32) {
    %c0_i32 = arith.constant 0 : i32
    %c0_i32_0 = arith.constant 0 : i32
    return %arg0, %c0_i32 : i32, i32
  }
  func.func @transform_1(%arg0: i32) -> (i32, i32) {
    %c0_i32 = arith.constant 0 : i32
    %c0_i32_0 = arith.constant 0 : i32
    %c0_i32_1 = arith.constant 0 : i32
    return %c0_i32, %c0_i32_0 : i32, i32
  }
  func.func @transform_2(%arg0: i32) -> (i32, i32) {
    %c0_i32 = arith.constant 0 : i32
    %c0_i32_0 = arith.constant 0 : i32
    %c0_i32_1 = arith.constant 0 : i32
    return %c0_i32, %c0_i32_0 : i32, i32
  }
  func.func @transform_3(%arg0: i32) -> (i32, i32) {
    %c0_i32 = arith.constant 0 : i32
    %c0_i32_0 = arith.constant 0 : i32
    %c0_i32_1 = arith.constant 0 : i32
    return %c0_i32, %c0_i32_0 : i32, i32
  }
  func.func @transform_4(%arg0: i32) -> (i32, i32) {
    %c0_i32 = arith.constant 0 : i32
    %c0_i32_0 = arith.constant 0 : i32
    %c0_i32_1 = arith.constant 0 : i32
    return %c0_i32, %c0_i32_0 : i32, i32
  }
  func.func @transform_5(%arg0: i32) -> (i32, i32) {
    %c0_i32 = arith.constant 0 : i32
    %c0_i32_0 = arith.constant 0 : i32
    return %arg0, %c0_i32 : i32, i32
  }
}

</mosaic_0001>

<llo_original>
// kernel: policy_forward.1
$region0: #{policy_forward.1}
  #allocation0 [shape = 'u32[]', space=smem, size = 0x4, offset = 0x4, fixed_abs, tag = 'smem constant byte address 0x4 - core index']
  #allocation1 [shape = 'u32[144,128]{1,0:T(1,128)}', space=vmem, size = 0x12000, scoped, tag = 'internal scratch']
  %s0 = inlined_call_operand.vmem [shape: bf16[8,32], index: 0, kind: input, shape index: {}]
  %s1 = inlined_call_operand.hbm [shape: bf16[32,256], index: 1, kind: input, shape index: {}]
  %s2 = inlined_call_operand.vmem [shape: bf16[1,256], index: 2, kind: input, shape index: {}]
  %s3 = inlined_call_operand.hbm [shape: bf16[256,128], index: 3, kind: input, shape index: {}]
  %s4 = inlined_call_operand.vmem [shape: f32[1,128], index: 4, kind: input, shape index: {}]
  %s5 = inlined_call_operand.hbm [shape: bf16[8,128], index: 5, kind: output, shape index: {}]
  %s6 = sld [smem:[#allocation0]]
  $region38: #{policy_forward.1} parent=0
    _
  %s8 = ssub.s32 1, %s6
  %s9 = scalar_select 0, %s8, %s6
  $region1: #{policy_forward.1} parent=0
    #allocation2 [shape = 'u8[16384]{0}', space=vmem, size = 0x4000, scoped, tag = 'input window, operand 1, single buffered']
    #allocation3 [shape = 's32[1]{0}', space=sflag, size = 0x4, scoped, tag = 'scoped memory for policy_forward.1']
    #allocation4 [shape = 's32[1]{0}', space=sflag, size = 0x4, scoped, tag = 'scoped memory for policy_forward.1']
    #allocation5 [shape = 'u8[65536]{0}', space=vmem, size = 0x10000, scoped, tag = 'input window, operand 3, single buffered']
    #allocation6 [shape = 's32[1]{0}', space=sflag, size = 0x4, scoped, tag = 'scoped memory for policy_forward.1']
    #allocation7 [shape = 'u8[2048]{0}', space=vmem, size = 0x800, scoped, tag = 'output window, operand 0, single buffered']
    %10 = vsyncpa [#allocation3], 0
    %11 = vsyncpa [#allocation6], 0
    %12 = vsyncpa [#allocation4], 0
    // Predicated region
    $region2: #{policy_forward.1} parent=1 // pred_check
      _
    $region3: #{policy_forward.1} parent=1 // pred_check_branch
      %14 = sbr.rel (0) target = $region5
    $region4: #{policy_forward.1} parent=1 // pred_region
      _
    $region5: #{policy_forward.1} parent=1 // pred_fallthru
      _
    // Predicated region
    $region6: #{policy_forward.1} parent=1 // pred_check
      _
    $region7: #{policy_forward.1} parent=1 // pred_check_branch
      %16 = sbr.rel (0) target = $region9
    $region8: #{policy_forward.1} parent=1 // pred_region
      %s18 = ssub.s32 512, 512
      %19 = vsyncadd [#allocation3], %s18
      %s20 = sshll.u32 [#allocation2], 4
      %s21 = int_to_ptr.vmem [resolvable:$true] %s20
      %26 = dma.hbm_to_vmem [thread:$0]  %s1, 512, %s21, [#allocation3], 128, 128, 8
    $region9: #{policy_forward.1} parent=1 // pred_fallthru
      _
    // Predicated region
    $region10: #{policy_forward.1} parent=1 // pred_check
      _
    $region11: #{policy_forward.1} parent=1 // pred_check_branch
      %28 = sbr.rel (0) target = $region13
    $region12: #{policy_forward.1} parent=1 // pred_region
      _
    $region13: #{policy_forward.1} parent=1 // pred_fallthru
      _
    // Predicated region
    $region14: #{policy_forward.1} parent=1 // pred_check
      _
    $region15: #{policy_forward.1} parent=1 // pred_check_branch
      %30 = sbr.rel (0) target = $region17
    $region16: #{policy_forward.1} parent=1 // pred_region
      %s32 = ssub.s32 2048, 2048
      %33 = vsyncadd [#allocation6], %s32
      %s34 = sshll.u32 [#allocation5], 4
      %s35 = int_to_ptr.vmem [resolvable:$true] %s34
      %40 = dma.hbm_to_vmem [thread:$0]  %s3, 2048, %s35, [#allocation6], 64, 64, 4
    $region17: #{policy_forward.1} parent=1 // pred_fallthru
      _
    // Predicated region
    $region18: #{policy_forward.1} parent=1 // pred_check
      _
    $region19: #{policy_forward.1} parent=1 // pred_check_branch
      %42 = sbr.rel (0) target = $region21
    $region20: #{policy_forward.1} parent=1 // pred_region
      _
    $region21: #{policy_forward.1} parent=1 // pred_fallthru
      _
    // Predicated region
    $region22: #{policy_forward.1} parent=1 // pred_check
      _
    $region23: #{policy_forward.1} parent=1 // pred_check_branch
      %44 = sbr.rel (0) target = $region25
    $region24: #{policy_forward.1} parent=1 // pred_region
      %45 = dma.done [#allocation3], 512
    $region25: #{policy_forward.1} parent=1 // pred_fallthru
      _
    // Predicated region
    $region26: #{policy_forward.1} parent=1 // pred_check
      _
    $region27: #{policy_forward.1} parent=1 // pred_check_branch
      %47 = sbr.rel (0) target = $region29
    $region28: #{policy_forward.1} parent=1 // pred_region
      %48 = dma.done [#allocation6], 2048
    $region29: #{policy_forward.1} parent=1 // pred_fallthru
      _
    %v50 = vld [vmem:[%s0] sm:$0xf]
    %v51 = vld [vmem:[#allocation2] sm:$0xff]
    %v52 = vld [vmem:[#allocation2 + $0x8] sm:$0xff]
    %v53 = vld [vmem:[#allocation2 + $0x10] sm:$0xff]
    %v54 = vld [vmem:[#allocation2 + $0x18] sm:$0xff]
    %v55 = vld [vmem:[%s2] sm:$0x3]
    %v56 = vunpack.c.l.bf16 %v55
    %v58 = vlaneseq
    %v59 = vshrl.u32 %v58, 7
    %v60 = vsub.s32 0, %v59
    %v61 = vrot.slane %v56, %v60
    %v62 = vlaneseq
    %v63 = vshrl.u32 %v62, 7
    %v64 = vsub.s32 2, %v63
    %v65 = vrot.slane %v56, %v64
    %v68 = vlaneseq
    %v69 = vshrl.u32 %v68, 7
    %v70 = vsub.s32 0, %v69
    %v71 = vrot.slane %v61, %v70
    %v72 = vlaneseq
    %v73 = vshrl.u32 %v72, 7
    %v74 = vsub.s32 0, %v73
    %v75 = vrot.slane %v65, %v74
    %v80 = vunpack.c.l.b16 %v51
    %v81 = vunpack.c.h.b16 %v51
    %v82 = vunpack.c.l.b16 %v52
    %v83 = vunpack.c.h.b16 %v52
    %v84 = vunpack.c.l.b16 %v53
    %v85 = vunpack.c.h.b16 %v53
    %v86 = vunpack.c.l.b16 %v54
    %v87 = vunpack.c.h.b16 %v54
    %v88 = vpack.c.b16 %v82, %v80
    %v89 = vpack.c.b16 %v83, %v81
    %v90 = vpack.c.b16 %v86, %v84
    %v91 = vpack.c.b16 %v87, %v85
    %vm96 = vcmask 261120
    %v98 = vsel %vm96, %v50, 0
    %100 = vmatprep.subr.bf16.mxu0 %v89
    %101 = vmatpush1.bf16.msra.mxu0 %v88
    %102 = vmatprep.subr.bf16.mxu0 %v91
    %103 = vmatpush1.bf16.msra.mxu0 %v90
    %104 = vmatprep.subr.bf16.mxu0 0
    %105 = vmatpush1.bf16.msra.mxu0 0
    %106 = vmatprep.subr.bf16.mxu0 0
    %107 = vmatpush1.bf16.msra.mxu0 0
    %108 = vmatprep.subr.bf16.mxu0 0
    %109 = vmatpush1.bf16.msra.mxu0 0
    %110 = vmatprep.subr.bf16.mxu0 0
    %111 = vmatpush1.bf16.msra.mxu0 0
    %112 = vmatprep.subr.bf16.mxu0 0
    %113 = vmatpush1.bf16.msra.mxu0 0
    %114 = vmatprep.subr.bf16.mxu0 0
    %115 = vmatpush1.bf16.msra.mxu0 0
    %116 = vmatprep.subr.bf16.mxu0 0
    %117 = vmatpush1.bf16.msra.mxu0 0
    %118 = vmatprep.subr.bf16.mxu0 0
    %119 = vmatpush1.bf16.msra.mxu0 0
    %120 = vmatprep.subr.bf16.mxu0 0
    %121 = vmatpush1.bf16.msra.mxu0 0
    %122 = vmatprep.subr.bf16.mxu0 0
    %123 = vmatpush1.bf16.msra.mxu0 0
    %124 = vmatprep.subr.bf16.mxu0 0
    %125 = vmatpush1.bf16.msra.mxu0 0
    %126 = vmatprep.subr.bf16.mxu0 0
    %127 = vmatpush1.bf16.msra.mxu0 0
    %128 = vmatprep.subr.bf16.mxu0 0
    %129 = vmatpush1.bf16.msra.mxu0 0
    %130 = vmatprep.subr.bf16.mxu0 0
    %131 = vmatpush1.bf16.msra.mxu0 0
    %132 = vmatprep.mubr.bf16.mxu0 0
    %133 = vmatmul.mubr.bf16.gmra.mrb[0].mxu0 %v98
    %v134 = vpop.f32.mrb[0].mxu0
    %v135 = vadd.f32 %v71, %v134
    %v136 = vpop.f32.mrb[0].mxu0
    %v137 = vadd.f32 %v75, %v136
    %v138 = vpop.f32.mrb[0].mxu0
    %v139 = vpop.f32.mrb[0].mxu0
    %140 = vdwg.mxu0
    %v141 = vmax.f32 %v135, 0.0
    %v142 = vmax.f32 %v137, 0.0
    %v143 = vpack.c.bf16 %v141, %v141
    %v144 = vpack.c.bf16 %v142, %v142
    %v145 = vld [vmem:[#allocation5] sm:$0xf]
    %v146 = vld [vmem:[#allocation5 + $0x4] sm:$0xf]
    %v147 = vld [vmem:[#allocation5 + $0x8] sm:$0xf]
    %v148 = vld [vmem:[#allocation5 + $0xc] sm:$0xf]
    %v149 = vld [vmem:[#allocation5 + $0x10] sm:$0xf]
    %v150 = vld [vmem:[#allocation5 + $0x14] sm:$0xf]
    %v151 = vld [vmem:[#allocation5 + $0x18] sm:$0xf]
    %v152 = vld [vmem:[#allocation5 + $0x1c] sm:$0xf]
    %v153 = vld [vmem:[#allocation5 + $0x20] sm:$0xf]
    %v154 = vld [vmem:[#allocation5 + $0x24] sm:$0xf]
    %v155 = vld [vmem:[#allocation5 + $0x28] sm:$0xf]
    %v156 = vld [vmem:[#allocation5 + $0x2c] sm:$0xf]
    %v157 = vld [vmem:[#allocation5 + $0x30] sm:$0xf]
    %v158 = vld [vmem:[#allocation5 + $0x34] sm:$0xf]
    %v159 = vld [vmem:[#allocation5 + $0x38] sm:$0xf]
    %v160 = vld [vmem:[#allocation5 + $0x3c] sm:$0xf]
    %v161 = vld [vmem:[#allocation5 + $0x40] sm:$0xf]
    %v162 = vld [vmem:[#allocation5 + $0x44] sm:$0xf]
    %v163 = vld [vmem:[#allocation5 + $0x48] sm:$0xf]
    %v164 = vld [vmem:[#allocation5 + $0x4c] sm:$0xf]
    %v165 = vld [vmem:[#allocation5 + $0x50] sm:$0xf]
    %v166 = vld [vmem:[#allocation5 + $0x54] sm:$0xf]
    %v167 = vld [vmem:[#allocation5 + $0x58] sm:$0xf]
    %v168 = vld [vmem:[#allocation5 + $0x5c] sm:$0xf]
    %v169 = vld [vmem:[#allocation5 + $0x60] sm:$0xf]
    %v170 = vld [vmem:[#allocation5 + $0x64] sm:$0xf]
    %v171 = vld [vmem:[#allocation5 + $0x68] sm:$0xf]
    %v172 = vld [vmem:[#allocation5 + $0x6c] sm:$0xf]
    %v173 = vld [vmem:[#allocation5 + $0x70] sm:$0xf]
    %v174 = vld [vmem:[#allocation5 + $0x74] sm:$0xf]
    %v175 = vld [vmem:[#allocation5 + $0x78] sm:$0xf]
    %v176 = vld [vmem:[#allocation5 + $0x7c] sm:$0xf]
    %v177 = vld [vmem:[%s4] sm:$0x1]
    %v179 = vlaneseq
    %v180 = vshrl.u32 %v179, 7
    %v181 = vsub.s32 0, %v180
    %v182 = vrot.slane %v177, %v181
    %v216 = vunpack.c.l.b16 %v145
    %v217 = vunpack.c.l.b16 %v146
    %v218 = vunpack.c.l.b16 %v147
    %v219 = vunpack.c.l.b16 %v148
    %v220 = vunpack.c.l.b16 %v149
    %v221 = vunpack.c.l.b16 %v150
    %v222 = vunpack.c.l.b16 %v151
    %v223 = vunpack.c.l.b16 %v152
    %v224 = vunpack.c.l.b16 %v153
    %v225 = vunpack.c.l.b16 %v154
    %v226 = vunpack.c.l.b16 %v155
    %v227 = vunpack.c.l.b16 %v156
    %v228 = vunpack.c.l.b16 %v157
    %v229 = vunpack.c.l.b16 %v158
    %v230 = vunpack.c.l.b16 %v159
    %v231 = vunpack.c.l.b16 %v160
    %v232 = vunpack.c.l.b16 %v161
    %v233 = vunpack.c.l.b16 %v162
    %v234 = vunpack.c.l.b16 %v163
    %v235 = vunpack.c.l.b16 %v164
    %v236 = vunpack.c.l.b16 %v165
    %v237 = vunpack.c.l.b16 %v166
    %v238 = vunpack.c.l.b16 %v167
    %v239 = vunpack.c.l.b16 %v168
    %v240 = vunpack.c.l.b16 %v169
    %v241 = vunpack.c.l.b16 %v170
    %v242 = vunpack.c.l.b16 %v171
    %v243 = vunpack.c.l.b16 %v172
    %v244 = vunpack.c.l.b16 %v173
    %v245 = vunpack.c.l.b16 %v174
    %v246 = vunpack.c.l.b16 %v175
    %v247 = vunpack.c.l.b16 %v176
    %v248 = vpack.c.b16 %v217, %v216
    %v249 = vpack.c.b16 %v219, %v218
    %v250 = vpack.c.b16 %v221, %v220
    %v251 = vpack.c.b16 %v223, %v222
    %v252 = vpack.c.b16 %v225, %v224
    %v253 = vpack.c.b16 %v227, %v226
    %v254 = vpack.c.b16 %v229, %v228
    %v255 = vpack.c.b16 %v231, %v230
    %v256 = vpack.c.b16 %v233, %v232
    %v257 = vpack.c.b16 %v235, %v234
    %v258 = vpack.c.b16 %v237, %v236
    %v259 = vpack.c.b16 %v239, %v238
    %v260 = vpack.c.b16 %v241, %v240
    %v261 = vpack.c.b16 %v243, %v242
    %v262 = vpack.c.b16 %v245, %v244
    %v263 = vpack.c.b16 %v247, %v246
    %280 = vmatprep.subr.bf16.mxu0 0
    %281 = vmatpush1.bf16.msra.mxu0 %v248
    %282 = vmatprep.subr.bf16.mxu0 0
    %283 = vmatpush1.bf16.msra.mxu0 %v249
    %284 = vmatprep.subr.bf16.mxu0 0
    %285 = vmatpush1.bf16.msra.mxu0 %v250
    %286 = vmatprep.subr.bf16.mxu0 0
    %287 = vmatpush1.bf16.msra.mxu0 %v251
    %288 = vmatprep.subr.bf16.mxu0 0
    %289 = vmatpush1.bf16.msra.mxu0 %v252
    %290 = vmatprep.subr.bf16.mxu0 0
    %291 = vmatpush1.bf16.msra.mxu0 %v253
    %292 = vmatprep.subr.bf16.mxu0 0
    %293 = vmatpush1.bf16.msra.mxu0 %v254
    %294 = vmatprep.subr.bf16.mxu0 0
    %295 = vmatpush1.bf16.msra.mxu0 %v255
    %296 = vmatprep.subr.bf16.mxu0 0
    %297 = vmatpush1.bf16.msra.mxu0 %v256
    %298 = vmatprep.subr.bf16.mxu0 0
    %299 = vmatpush1.bf16.msra.mxu0 %v257
    %300 = vmatprep.subr.bf16.mxu0 0
    %301 = vmatpush1.bf16.msra.mxu0 %v258
    %302 = vmatprep.subr.bf16.mxu0 0
    %303 = vmatpush1.bf16.msra.mxu0 %v259
    %304 = vmatprep.subr.bf16.mxu0 0
    %305 = vmatpush1.bf16.msra.mxu0 %v260
    %306 = vmatprep.subr.bf16.mxu0 0
    %307 = vmatpush1.bf16.msra.mxu0 %v261
    %308 = vmatprep.subr.bf16.mxu0 0
    %309 = vmatpush1.bf16.msra.mxu0 %v262
    %310 = vmatprep.subr.bf16.mxu0 0
    %311 = vmatpush1.bf16.msra.mxu0 %v263
    %312 = vmatprep.mubr.bf16.mxu0 %v144
    %313 = vmatmul.mubr.bf16.gmra.mrb[0].mxu0 %v143
    %v314 = vpop.f32.mrb[0].mxu0
    %v315 = vadd.f32 %v182, %v314
    %v316 = vpop.f32.mrb[0].mxu0
    %v317 = vpop.f32.mrb[0].mxu0
    %v318 = vpop.f32.mrb[0].mxu0
    %319 = vdwg.mxu0
    %v320 = vpack.c.bf16 %v315, %v315
    %321 = vst [vmem:[#allocation7] sm:$0xf] %v320
    // Predicated region
    $region30: #{policy_forward.1} parent=1 // pred_check
      _
    $region31: #{policy_forward.1} parent=1 // pred_check_branch
      %323 = sbr.rel (0) target = $region33
    $region32: #{policy_forward.1} parent=1 // pred_region
      %s325 = ssub.s32 64, 64
      %326 = vsyncadd [#allocation4], %s325
      %s328 = sshll.u32 [#allocation7], 4
      %s329 = int_to_ptr.vmem [resolvable:$true] %s328
      %331 = dma.vmem_to_hbm [thread:$0]  %s329, 64, %s5, [#allocation4]
    $region33: #{policy_forward.1} parent=1 // pred_fallthru
      _
    // Predicated region
    $region34: #{policy_forward.1} parent=1 // pred_check
      _
    $region35: #{policy_forward.1} parent=1 // pred_check_branch
      %333 = sbr.rel (0) target = $region37
    $region36: #{policy_forward.1} parent=1 // pred_region
      %334 = dma.done [#allocation4], 64
    $region37: #{policy_forward.1} parent=1 // pred_fallthru
      _
    %335 = vsyncpa [#allocation3], 1
    %336 = vsyncpa [#allocation6], 1
    %337 = vsyncpa [#allocation4], 1

</llo_original>
